<compile_context>
chip_gen: v7x
topology: tpu7x:2x2x1
jax: 0.10.0
libtpu: 0.0.40
codegen_flags: <defaults>
</compile_context>

<pallas_src>
import jax
import jax.numpy as jnp
from jax.experimental import pallas as pl
from jax.experimental.pallas import tpu as pltpu


def _classifier_head_kernel(x_ref, w_ref, b_ref, o_ref):
    # x: (TB, H) native dtype, w: (H, C) native dtype, b: (1, C) f32, o: (TB, C) f32
    # Native-dtype MXU matmul with f32 accumulation (no VPU upcast of the tile).
    logits = jnp.dot(x_ref[...], w_ref[...], preferred_element_type=jnp.float32)
    logits = logits + b_ref[...]

    # Numerically-stable row softmax over dim=1 (matches torch.softmax).
    m = jnp.max(logits, axis=1, keepdims=True)
    e = jnp.exp(logits - m)
    s = jnp.sum(e, axis=1, keepdims=True)
    o_ref[...] = (e / s).astype(o_ref.dtype)


def pb_linear_classifier_head(pooled_output, weight, bias, *, block_b=None):
    """Pallas implementation of: softmax(pooled_output @ weight.T + bias, dim=1).

    Args:
      pooled_output: (B, H) array (BERT pooler output), f32 or bf16.
      weight:        (C, H) array (torch nn.Linear weight layout), C == 2.
      bias:          (C,)   array.
      block_b:       optional batch-tile override (rows per grid step).
    Returns:
      (B, C) float32 softmax probabilities.
    """
    B, H = pooled_output.shape
    C = weight.shape[0]

    act_dtype = pooled_output.dtype
    # Pre-transpose the weight and match the activation dtype so the matmul
    # runs natively on the MXU (bf16 x bf16 -> f32 accumulate when act is bf16).
    w_t = weight.T.astype(act_dtype)             # (H, C)
    b2 = bias.reshape(1, C).astype(jnp.float32)  # keep refs 2-D for TPU layout

    itemsize = jnp.dtype(act_dtype).itemsize
    # Sublane packing: 8 rows for 4-byte, 16 for 2-byte, 32 for 1-byte dtypes.
    sublane = max(8, 32 // itemsize)

    if block_b is None:
        # Keep 2 (double-buffered) activation tiles within a conservative VMEM
        # budget; v5e's 16 MiB default scoped VMEM is the tightest target.
        vmem_budget = 8 * 1024 * 1024
        block_b = min(2048, max(sublane, vmem_budget // (2 * H * itemsize)))

    if B <= block_b:
        tb = B  # single block == full array dims (always a legal block shape)
    else:
        tb = max(sublane, (block_b // sublane) * sublane)

    grid_b = pl.cdiv(B, tb)  # tail block (if any) is masked on write-back

    # Advisory cost hint so XLA can overlap this small op with its neighbours.
    cost = pl.CostEstimate(
        flops=2 * B * H * C,
        transcendentals=B * C,
        bytes_accessed=B * H * itemsize + H * C * itemsize + C * 4 + B * C * 4,
    )

    return pl.pallas_call(
        _classifier_head_kernel,
        out_shape=jax.ShapeDtypeStruct((B, C), jnp.float32),
        grid=(grid_b,),
        in_specs=[
            pl.BlockSpec((tb, H), lambda i: (i, 0)),   # streamed activations
            pl.BlockSpec((H, C), lambda i: (0, 0)),    # weight stays resident
            pl.BlockSpec((1, C), lambda i: (0, 0)),    # bias stays resident
        ],
        out_specs=pl.BlockSpec((tb, C), lambda i: (i, 0)),
        compiler_params=pltpu.CompilerParams(
            dimension_semantics=("parallel",),         # megacore-shardable on v7x
            vmem_limit_bytes=64 * 1024 * 1024,         # headroom for large tiles
        ),
        cost_estimate=cost,
    )(pooled_output, w_t, b2)


if __name__ == "__main__":
    # Small, module-consistent shapes: batch=32, hidden_size=32, num_classes=2.
    # block_b=16 forces the tiled, pipelined, "parallel" grid path (grid=(2,)).
    B, H = 32, 32

    key = jax.random.PRNGKey(0)
    k_x, k_w, k_b = jax.random.split(key, 3)

    # Synthetic pooler_output (stand-in for self.model(...).pooler_output),
    # in bf16 as a typical inference activation dtype.
    pooled = jax.random.normal(k_x, (B, H), dtype=jnp.float32).astype(jnp.bfloat16)

    # Deterministic init of nn.Linear(hidden_size, 2) parameters.
    bound = 1.0 / (H ** 0.5)
    weight = jax.random.uniform(k_w, (2, H), dtype=jnp.float32,
                                minval=-bound, maxval=bound)
    bias = jax.random.uniform(k_b, (2,), dtype=jnp.float32,
                              minval=-bound, maxval=bound)

    out = pb_linear_classifier_head(pooled, weight, bias, block_b=16)
    out = jax.block_until_ready(out)

    # Pure-JAX reference on the same (bf16-representable) values, in f32.
    x32 = pooled.astype(jnp.float32)
    w32 = weight.astype(jnp.bfloat16).astype(jnp.float32)
    ref = jax.nn.softmax(x32 @ w32.T + bias, axis=1)

    assert out.shape == (B, 2)
    assert out.dtype == jnp.float32
    assert jnp.allclose(out, ref, atol=1e-5, rtol=1e-5), (out, ref)
    assert jnp.allclose(jnp.sum(out, axis=1), 1.0, atol=1e-5)

    print("KERNEL_OK")
</pallas_src>

<mosaic_0001>
module attributes {stable_mosaic.version = 11 : i64} {
  func.func @_classifier_head_kernel(%arg0: i32, %arg1: memref<16x32xbf16, #tpu.memory_space<vmem>>, %arg2: memref<32x2xbf16, #tpu.memory_space<vmem>>, %arg3: memref<1x2xf32, #tpu.memory_space<vmem>>, %arg4: memref<16x2xf32, #tpu.memory_space<vmem>>) attributes {dimension_semantics = [#tpu.dimension_semantics<parallel>], iteration_bounds = array<i64: 2>, scalar_prefetch = 0 : i64, scratch_operands = 0 : i64, tpu.core_type = #tpu.core_type<tc>, window_params = [{transform_indices = @transform_0, window_bounds = array<i64: 16, 32>}, {pipeline_mode = #tpu.pipeline_mode<synchronous>, transform_indices = @transform_1, window_bounds = array<i64: 32, 2>}, {pipeline_mode = #tpu.pipeline_mode<synchronous>, transform_indices = @transform_2, window_bounds = array<i64: 1, 2>}, {transform_indices = @transform_3, window_bounds = array<i64: 16, 2>}]} {
    %c0 = arith.constant 0 : index
    %c0_0 = arith.constant 0 : index
    %0 = vector.load %arg1[%c0, %c0_0] : memref<16x32xbf16, #tpu.memory_space<vmem>>, vector<16x32xbf16>
    %c0_1 = arith.constant 0 : index
    %c0_2 = arith.constant 0 : index
    %1 = vector.load %arg2[%c0_1, %c0_2] : memref<32x2xbf16, #tpu.memory_space<vmem>>, vector<32x2xbf16>
    %cst = arith.constant dense<0.000000e+00> : vector<16x2xf32>
    %2 = tpu.matmul %0, %1, %cst {dimension_numbers = #tpu.dot_dimension_numbers<[1], [0], [0], [1], [0, 0, 1, 1], [], []>} : vector<16x32xbf16>, vector<32x2xbf16>, vector<16x2xf32> -> vector<16x2xf32>
    %c0_3 = arith.constant 0 : index
    %c0_4 = arith.constant 0 : index
    %3 = vector.load %arg3[%c0_3, %c0_4] : memref<1x2xf32, #tpu.memory_space<vmem>>, vector<1x2xf32>
    %4 = vector.broadcast %3 : vector<1x2xf32> to vector<16x2xf32>
    %5 = arith.addf %2, %4 : vector<16x2xf32>
    %cst_5 = arith.constant dense<0xFF800000> : vector<16xf32>
    %6 = vector.multi_reduction <maximumf>, %5, %cst_5 [1] : vector<16x2xf32> to vector<16xf32>
    %7 = vector.shape_cast %6 : vector<16xf32> to vector<16x1xf32>
    %8 = vector.broadcast %7 : vector<16x1xf32> to vector<16x2xf32>
    %9 = arith.subf %5, %8 : vector<16x2xf32>
    %10 = math.exp %9 : vector<16x2xf32>
    %cst_6 = arith.constant dense<0.000000e+00> : vector<16xf32>
    %11 = vector.multi_reduction <add>, %10, %cst_6 [1] : vector<16x2xf32> to vector<16xf32>
    %12 = vector.shape_cast %11 : vector<16xf32> to vector<16x1xf32>
    %13 = vector.broadcast %12 : vector<16x1xf32> to vector<16x2xf32>
    %14 = arith.divf %10, %13 : vector<16x2xf32>
    %c0_7 = arith.constant 0 : index
    %c0_8 = arith.constant 0 : index
    %15 = vector.load %arg4[%c0_7, %c0_8] : memref<16x2xf32, #tpu.memory_space<vmem>>, vector<16x2xf32>
    tpu.vector_store %arg4[%c0_7, %c0_8], %14 {strides = array<i32>} : memref<16x2xf32, #tpu.memory_space<vmem>>, vector<16x2xf32>,
    return
  }
  func.func @transform_0(%arg0: i32) -> (i32, i32) {
    %c0_i32 = arith.constant 0 : i32
    %c0_i32_0 = arith.constant 0 : i32
    return %arg0, %c0_i32 : i32, i32
  }
  func.func @transform_1(%arg0: i32) -> (i32, i32) {
    %c0_i32 = arith.constant 0 : i32
    %c0_i32_0 = arith.constant 0 : i32
    %c0_i32_1 = arith.constant 0 : i32
    return %c0_i32, %c0_i32_0 : i32, i32
  }
  func.func @transform_2(%arg0: i32) -> (i32, i32) {
    %c0_i32 = arith.constant 0 : i32
    %c0_i32_0 = arith.constant 0 : i32
    %c0_i32_1 = arith.constant 0 : i32
    return %c0_i32, %c0_i32_0 : i32, i32
  }
  func.func @transform_3(%arg0: i32) -> (i32, i32) {
    %c0_i32 = arith.constant 0 : i32
    %c0_i32_0 = arith.constant 0 : i32
    return %arg0, %c0_i32 : i32, i32
  }
}

</mosaic_0001>

<llo_original>
// kernel: tpu_custom_call.1
$region0: #{tpu_custom_call.1}
  #allocation0 [shape = 'u32[]', space=smem, size = 0x4, offset = 0x4, fixed_abs, tag = 'smem constant byte address 0x4 - core index']
  #allocation1 [shape = 'u32[144,128]{1,0:T(1,128)}', space=vmem, size = 0x12000, scoped, tag = 'internal scratch']
  %s0 = inlined_call_operand.hbm [shape: bf16[32,32], index: 0, kind: input, shape index: {}]
  %s1 = inlined_call_operand.hbm [shape: bf16[32,2], index: 1, kind: input, shape index: {}]
  %s2 = inlined_call_operand.hbm [shape: f32[1,2], index: 2, kind: input, shape index: {}]
  %s3 = inlined_call_operand.hbm [shape: f32[32,2], index: 3, kind: output, shape index: {}]
  %s4 = sld [smem:[#allocation0]]
  $region57: #{tpu_custom_call.1} parent=0
    _
  %s6 = ssub.s32 1, %s4
  %s7 = scalar_select 0, %s6, %s4
  $region1: #{tpu_custom_call.1} parent=0
    #allocation2 [shape = 'u8[8192]{0}', space=vmem, size = 0x2000, scoped, tag = 'input window, operand 0']
    #allocation3 [shape = 's32[2]{0}', space=sflag, size = 0x8, scoped, tag = 'scoped memory for tpu_custom_call.1']
    #allocation4 [shape = 's32[2]{0}', space=sflag, size = 0x8, scoped, tag = 'scoped memory for tpu_custom_call.1']
    #allocation5 [shape = 'u8[8192]{0}', space=vmem, size = 0x2000, scoped, tag = 'input window, operand 1, single buffered']
    #allocation6 [shape = 's32[1]{0}', space=sflag, size = 0x4, scoped, tag = 'scoped memory for tpu_custom_call.1']
    #allocation7 [shape = 'u8[512]{0}', space=vmem, size = 0x400, scoped, tag = 'input window, operand 2, single buffered']
    #allocation8 [shape = 'u8[16384]{0}', space=vmem, size = 0x4000, scoped, tag = 'output window, operand 0']
    %8 = vsyncpa [#allocation3], 0
    %s9 = scalar_lea.sflag [#allocation3], 1
    %10 = vsyncpa %s9, 0
    %11 = vsyncpa [#allocation6], 0
    %12 = vsyncpa [#allocation4], 0
    %s13 = scalar_lea.sflag [#allocation4], 1
    %14 = vsyncpa %s13, 0
    loop: start=0, step=1, limit=4
    $region2: #{tpu_custom_call.1} parent=1 // loop_pre_header
      _
    $region3: #{tpu_custom_call.1} parent=1 // loop_header
      %s16 = sphi 0, %s20
      %p17 = scmp.ge.s32.totalorder %s16, 4
      %s26 = sphi 0, %s28
      %s29 = sphi 0, %s26
      %s30 = sphi 0, %s29
      %s46 = sphi 0, %s30
      %s50 = sphi 0, %s50
      %s52 = sphi 0, %s50
      %s53 = sphi 0, %s52
      %s67 = sphi 0, %s53
      %s71 = sphi 0, %s71
      %s73 = sphi 0, %s71
      %s74 = sphi 0, %s73
      %s88 = sphi 0, %s74
      %s94 = sphi 0, %s96
      %s97 = sphi 0, %s94
      %s98 = sphi 0, %s97
      %s114 = sphi 0, %s98
    $region4: #{tpu_custom_call.1} parent=1 // loop_header_branch
      %19 = sbr.rel (%p17) target = $region8
    $region5: #{tpu_custom_call.1} parent=1 // loop_body
      %s21 = ssub.s32 %s16, 1
      %s22 = ssub.s32 %s16, 2
      %s23 = sadd.s32 %s16, 1
      %s24 = ssub.s32 %s16, %s23
      %p25 = scmp.eq.s32.totalorder %s24, 0
      %s27 = sadd.s32 %s26, 1
      %s28 = scalar_select %p25, %s26, %s27
      %p31 = pneg %p25
      %p32 = scmp.eq.s32.totalorder %s16, 1
      %p33 = por %p31, %p32
      %p34 = scmp.ne.s32.totalorder %s26, %s29
      %p35 = scmp.eq.s32.totalorder %s16, 0
      %p36 = por %p34, %p35
      %p37 = scmp.ne.s32.totalorder %s26, %s29
      %p38 = scmp.eq.s32.totalorder %s21, 1
      %p39 = por %p37, %p38
      %p40 = scmp.ne.s32.totalorder %s29, %s30
      %p41 = scmp.eq.s32.totalorder %s21, 0
      %p42 = por %p40, %p41
      %p43 = scmp.ne.s32.totalorder %s29, %s30
      %p44 = scmp.eq.s32.totalorder %s22, 1
      %p45 = por %p43, %p44
      %p47 = scmp.ne.s32.totalorder %s30, %s46
      %p48 = scmp.eq.s32.totalorder %s22, 0
      %p49 = por %p47, %p48
      %s51 = sadd.s32 %s50, 1
      %p54 = scmp.eq.s32.totalorder %s16, 1
      %p55 = scmp.ne.s32.totalorder %s50, %s52
      %p56 = scmp.eq.s32.totalorder %s16, 0
      %p57 = por %p55, %p56
      %p58 = scmp.ne.s32.totalorder %s50, %s52
      %p59 = scmp.eq.s32.totalorder %s21, 1
      %p60 = por %p58, %p59
      %p61 = scmp.ne.s32.totalorder %s52, %s53
      %p62 = scmp.eq.s32.totalorder %s21, 0
      %p63 = por %p61, %p62
      %p64 = scmp.ne.s32.totalorder %s52, %s53
      %p65 = scmp.eq.s32.totalorder %s22, 1
      %p66 = por %p64, %p65
      %p68 = scmp.ne.s32.totalorder %s53, %s67
      %p69 = scmp.eq.s32.totalorder %s22, 0
      %p70 = por %p68, %p69
      %s72 = sadd.s32 %s71, 1
      %p75 = scmp.eq.s32.totalorder %s16, 1
      %p76 = scmp.ne.s32.totalorder %s71, %s73
      %p77 = scmp.eq.s32.totalorder %s16, 0
      %p78 = por %p76, %p77
      %p79 = scmp.ne.s32.totalorder %s71, %s73
      %p80 = scmp.eq.s32.totalorder %s21, 1
      %p81 = por %p79, %p80
      %p82 = scmp.ne.s32.totalorder %s73, %s74
      %p83 = scmp.eq.s32.totalorder %s21, 0
      %p84 = por %p82, %p83
      %p85 = scmp.ne.s32.totalorder %s73, %s74
      %p86 = scmp.eq.s32.totalorder %s22, 1
      %p87 = por %p85, %p86
      %p89 = scmp.ne.s32.totalorder %s74, %s88
      %p90 = scmp.eq.s32.totalorder %s22, 0
      %p91 = por %p89, %p90
      %s92 = ssub.s32 %s16, %s23
      %p93 = scmp.eq.s32.totalorder %s92, 0
      %s95 = sadd.s32 %s94, 1
      %s96 = scalar_select %p93, %s94, %s95
      %p99 = pneg %p93
      %p100 = scmp.eq.s32.totalorder %s16, 1
      %p101 = por %p99, %p100
      %p102 = scmp.ne.s32.totalorder %s94, %s97
      %p103 = scmp.eq.s32.totalorder %s16, 0
      %p104 = por %p102, %p103
      %p105 = scmp.ne.s32.totalorder %s94, %s97
      %p106 = scmp.eq.s32.totalorder %s21, 1
      %p107 = por %p105, %p106
      %p108 = scmp.ne.s32.totalorder %s97, %s98
      %p109 = scmp.eq.s32.totalorder %s21, 0
      %p110 = por %p108, %p109
      %p111 = scmp.ne.s32.totalorder %s97, %s98
      %p112 = scmp.eq.s32.totalorder %s22, 1
      %p113 = por %p111, %p112
      %p115 = scmp.ne.s32.totalorder %s98, %s114
      %p116 = scmp.eq.s32.totalorder %s22, 0
      %p117 = por %p115, %p116
      %p118 = scmp.le.s32.totalorder 1, %s16
      %p119 = scmp.lt.s32.totalorder %s16, 3
      %p120 = pnand %p118, %p119
      %p121 = pneg %p120
      // Predicated region
      $region9: #{tpu_custom_call.1} parent=5 // pred_check
        _
      $region10: #{tpu_custom_call.1} parent=5 // pred_check_branch
        %123 = sbr.rel (%p120) target = $region12
      $region11: #{tpu_custom_call.1} parent=5 // pred_region
        %s124 = ssub.s32 %s16, 1
        // Predicated region
        $region13: #{tpu_custom_call.1} parent=11 // pred_check
          %p125 = pneg %p63
        $region14: #{tpu_custom_call.1} parent=11 // pred_check_branch
          %127 = sbr.rel (%p125) target = $region16
        $region15: #{tpu_custom_call.1} parent=11 // pred_region
          %s129 = ssub.s32 256, 256
          %130 = vsyncadd [#allocation6], %s129
          %s131 = sshll.u32 [#allocation5], 4
          %s132 = int_to_ptr.vmem [resolvable:$true] %s131
          %137 = dma.hbm_to_vmem [thread:$0]  %s1, 256, %s132, [#allocation6], 64, 64, 4
        $region16: #{tpu_custom_call.1} parent=11 // pred_fallthru
          _
        // Predicated region
        $region17: #{tpu_custom_call.1} parent=11 // pred_check
          %p138 = pneg %p84
        $region18: #{tpu_custom_call.1} parent=11 // pred_check_branch
          %140 = sbr.rel (%p138) target = $region20
        $region19: #{tpu_custom_call.1} parent=11 // pred_region
          %s142 = ssub.s32 16, 16
          %143 = vsyncadd [#allocation6], %s142
          %s145 = sshll.u32 [#allocation7], 4
          %s146 = int_to_ptr.vmem [resolvable:$true] %s145
          %148 = dma.hbm_to_vmem [thread:$0]  %s2, 16, %s146, [#allocation6]
        $region20: #{tpu_custom_call.1} parent=11 // pred_fallthru
          _
      $region12: #{tpu_custom_call.1} parent=5 // pred_fallthru
        _
      %p149 = scmp.lt.s32.totalorder %s16, 2
      // Predicated region
      $region21: #{tpu_custom_call.1} parent=5 // pred_check
        %p150 = pneg %p149
      $region22: #{tpu_custom_call.1} parent=5 // pred_check_branch
        %152 = sbr.rel (%p150) target = $region24
      $region23: #{tpu_custom_call.1} parent=5 // pred_region
        // Predicated region
        $region25: #{tpu_custom_call.1} parent=23 // pred_check
          %p153 = pneg %p36
        $region26: #{tpu_custom_call.1} parent=23 // pred_check_branch
          %155 = sbr.rel (%p153) target = $region28
        $region27: #{tpu_custom_call.1} parent=23 // pred_region
          %s156 = sand.u32 %s26, 1
          %s157 = scalar_lea.sflag [#allocation3], %s156
          %s158 = sand.u32 %s26, 1
          %s159 = smul.addr %s158, 8
          %s160 = scalar_lea.vmem [#allocation2], %s159
          %s161 = smul.u32 2, %s16
          %s163 = ssub.s32 128, 128
          %164 = vsyncadd %s157, %s163
          %s165 = smul.addr %s161, 64
          %s166 = scalar_lea.hbm %s0, %s165
          %s167 = sshll.u32 %s160, 4
          %s168 = int_to_ptr.vmem [resolvable:$true] %s167
          %173 = dma.hbm_to_vmem [thread:$0]  %s166, 128, %s168, %s157, 64, 64, 4
        $region28: #{tpu_custom_call.1} parent=23 // pred_fallthru
          _
      $region24: #{tpu_custom_call.1} parent=5 // pred_fallthru
        _
      %p174 = scmp.le.s32.totalorder 1, %s16
      %p175 = scmp.lt.s32.totalorder %s16, 3
      %p176 = pnand %p174, %p175
      %p177 = pneg %p176
      // Predicated region
      $region29: #{tpu_custom_call.1} parent=5 // pred_check
        _
      $region30: #{tpu_custom_call.1} parent=5 // pred_check_branch
        %179 = sbr.rel (%p176) target = $region32
      $region31: #{tpu_custom_call.1} parent=5 // pred_region
        %s180 = ssub.s32 %s16, 1
        %s181 = sand.u32 %s29, 1
        %s182 = scalar_lea.sflag [#allocation3], %s181
        %s183 = sand.u32 %s29, 1
        %s184 = smul.addr %s183, 8
        %s185 = scalar_lea.vmem [#allocation2], %s184
        // Predicated region
        $region33: #{tpu_custom_call.1} parent=31 // pred_check
          %p186 = pneg %p42
        $region34: #{tpu_custom_call.1} parent=31 // pred_check_branch
          %188 = sbr.rel (%p186) target = $region36
        $region35: #{tpu_custom_call.1} parent=31 // pred_region
          %189 = dma.done %s182, 128
        $region36: #{tpu_custom_call.1} parent=31 // pred_fallthru
          _
        // Predicated region
        $region37: #{tpu_custom_call.1} parent=31 // pred_check
          %p190 = pneg %p63
        $region38: #{tpu_custom_call.1} parent=31 // pred_check_branch
          %192 = sbr.rel (%p190) target = $region40
        $region39: #{tpu_custom_call.1} parent=31 // pred_region
          %193 = dma.done [#allocation6], 256
        $region40: #{tpu_custom_call.1} parent=31 // pred_fallthru
          _
        // Predicated region
        $region41: #{tpu_custom_call.1} parent=31 // pred_check
          %p194 = pneg %p84
        $region42: #{tpu_custom_call.1} parent=31 // pred_check_branch
          %196 = sbr.rel (%p194) target = $region44
        $region43: #{tpu_custom_call.1} parent=31 // pred_region
          %197 = dma.done [#allocation6], 16
        $region44: #{tpu_custom_call.1} parent=31 // pred_fallthru
          _
        %s198 = sand.u32 %s29, 1
        %s199 = scalar_lea.sflag [#allocation3], %s198
        %s200 = sand.u32 %s29, 1
        %s201 = smul.addr %s200, 8
        %s202 = scalar_lea.vmem [#allocation2], %s201
        %p203 = pneg %p42
        %p204 = pneg %p39
        %p205 = pneg %p63
        %p206 = pneg %p60
        %p207 = pneg %p84
        %p208 = pneg %p81
        %p209 = pneg %p110
        %p210 = pneg %p107
        %s211 = sand.u32 %s97, 1
        %s212 = scalar_lea.sflag [#allocation4], %s211
        %s213 = sand.u32 %s97, 1
        %s214 = smul.addr %s213, 16
        %s215 = scalar_lea.vmem [#allocation8], %s214
        %s216 = smul.u32 2, %s21
        %s217 = smul.u32 2, %s21
        %v219 = vld [vmem:[%s185] sm:$0xf]
        %v220 = vld [vmem:[%s185 + $0x4] sm:$0xf]
        %v221 = vld [vmem:[#allocation5] sm:$0xf]
        %v222 = vld [vmem:[#allocation5 + $0x4] sm:$0xf]
        %v223 = vld [vmem:[#allocation5 + $0x8] sm:$0xf]
        %v224 = vld [vmem:[#allocation5 + $0xc] sm:$0xf]
        %v225 = vld [vmem:[#allocation7] sm:$0x1]
        %v227 = vlaneseq
        %v228 = vshrl.u32 %v227, 7
        %v229 = vsub.s32 0, %v228
        %v230 = vrot.slane %v225, %v229
        %v234 = vunpack.c.l.b16 %v219
        %v235 = vunpack.c.l.b16 %v220
        %v236 = vpack.c.b16 %v235, %v234
        %v241 = vunpack.c.l.b16 %v221
        %v242 = vunpack.c.l.b16 %v222
        %v243 = vunpack.c.l.b16 %v223
        %v244 = vunpack.c.l.b16 %v224
        %v245 = vpack.c.b16 %v242, %v241
        %v246 = vpack.c.b16 %v244, %v243
        %vm249 = vcmask 261120
        %v251 = vsel %vm249, %v236, 0
        %253 = vmatprep.subr.bf16.mxu0 0
        %254 = vmatpush1.bf16.msra.mxu0 %v245
        %255 = vmatprep.subr.bf16.mxu0 0
        %256 = vmatpush1.bf16.msra.mxu0 %v246
        %257 = vmatprep.subr.bf16.mxu0 0
        %258 = vmatpush1.bf16.msra.mxu0 0
        %259 = vmatprep.subr.bf16.mxu0 0
        %260 = vmatpush1.bf16.msra.mxu0 0
        %261 = vmatprep.subr.bf16.mxu0 0
        %262 = vmatpush1.bf16.msra.mxu0 0
        %263 = vmatprep.subr.bf16.mxu0 0
        %264 = vmatpush1.bf16.msra.mxu0 0
        %265 = vmatprep.subr.bf16.mxu0 0
        %266 = vmatpush1.bf16.msra.mxu0 0
        %267 = vmatprep.subr.bf16.mxu0 0
        %268 = vmatpush1.bf16.msra.mxu0 0
        %269 = vmatprep.subr.bf16.mxu0 0
        %270 = vmatpush1.bf16.msra.mxu0 0
        %271 = vmatprep.subr.bf16.mxu0 0
        %272 = vmatpush1.bf16.msra.mxu0 0
        %273 = vmatprep.subr.bf16.mxu0 0
        %274 = vmatpush1.bf16.msra.mxu0 0
        %275 = vmatprep.subr.bf16.mxu0 0
        %276 = vmatpush1.bf16.msra.mxu0 0
        %277 = vmatprep.subr.bf16.mxu0 0
        %278 = vmatpush1.bf16.msra.mxu0 0
        %279 = vmatprep.subr.bf16.mxu0 0
        %280 = vmatpush1.bf16.msra.mxu0 0
        %281 = vmatprep.subr.bf16.mxu0 0
        %282 = vmatpush1.bf16.msra.mxu0 0
        %283 = vmatprep.subr.bf16.mxu0 0
        %284 = vmatpush1.bf16.msra.mxu0 0
        %285 = vmatprep.mubr.bf16.mxu0 0
        %286 = vmatmul.mubr.bf16.gmra.mrb[0].mxu0 %v251
        %v287 = vpop.f32.mrb[0].mxu0
        %v288 = vadd.f32 %v230, %v287
        %v289 = vpop.f32.mrb[0].mxu0
        %v290 = vpop.f32.mrb[0].mxu0
        %v291 = vadd.f32 %v230, %v290
        %v292 = vpop.f32.mrb[0].mxu0
        %293 = vdwg.mxu0
        %vm294 = vcmask 15360
        %v295 = vsel %vm294, %v288, -inf
        %296 = vmax.xlane.f32.xlu0 %v295
        %v297 = vpop.xlane.xlu0 %296
        %v298 = vsel %vm294, %v291, -inf
        %299 = vmax.xlane.f32.xlu0 %v298
        %v300 = vpop.xlane.xlu0 %299
        %v301 = vsub.f32 %v288, %v297
        %v302 = vsub.f32 %v291, %v300
        %v303 = vmul.f32 %v301, 1.442695
        %v304 = vpow.pop %v303
        %v305 = vmul.f32 %v302, 1.442695
        %v306 = vpow.pop %v305
        %v307 = vsel %vm294, %v304, 0.0
        %308 = vadd.xlane.f32.xlu0 %v307
        %v309 = vpop.xlane.xlu0 %308
        %v310 = vsel %vm294, %v306, 0.0
        %311 = vadd.xlane.f32.xlu0 %v310
        %v312 = vpop.xlane.xlu0 %311
        %v313 = vrcp.pop %v309
        %v314 = vmul.f32 %v304, %v313
        %v315 = vrcp.pop %v312
        %v316 = vmul.f32 %v306, %v315
        %317 = vst.msk [vmem:[%s215] sm:$0xff] %vm294, %v314
        %318 = vst.msk [vmem:[%s215 + $0x8] sm:$0xff] %vm294, %v316
        %s319 = sand.u32 %s97, 1
        %s320 = scalar_lea.sflag [#allocation4], %s319
        %s321 = sand.u32 %s97, 1
        %s322 = smul.addr %s321, 16
        %s323 = scalar_lea.vmem [#allocation8], %s322
        // Predicated region
        $region45: #{tpu_custom_call.1} parent=31 // pred_check
          %p324 = pneg %p107
        $region46: #{tpu_custom_call.1} parent=31 // pred_check_branch
          %326 = sbr.rel (%p324) target = $region48
        $region47: #{tpu_custom_call.1} parent=31 // pred_region
          %s327 = smul.u32 2, %s21
          %s329 = ssub.s32 256, 256
          %330 = vsyncadd %s320, %s329
          %s331 = smul.addr %s327, 128
          %s332 = scalar_lea.hbm %s3, %s331
          %s333 = sshll.u32 %s323, 4
          %s334 = int_to_ptr.vmem [resolvable:$true] %s333
          %339 = dma.vmem_to_hbm [thread:$0]  %s334, 256, %s332, %s320, 128, 128, 8
        $region48: #{tpu_custom_call.1} parent=31 // pred_fallthru
          _
      $region32: #{tpu_custom_call.1} parent=5 // pred_fallthru
        _
      %p340 = scmp.le.s32.totalorder 2, %s16
      // Predicated region
      $region49: #{tpu_custom_call.1} parent=5 // pred_check
        %p341 = pneg %p340
      $region50: #{tpu_custom_call.1} parent=5 // pred_check_branch
        %343 = sbr.rel (%p341) target = $region52
      $region51: #{tpu_custom_call.1} parent=5 // pred_region
        %s344 = ssub.s32 %s16, 2
        // Predicated region
        $region53: #{tpu_custom_call.1} parent=51 // pred_check
          %p345 = pneg %p113
        $region54: #{tpu_custom_call.1} parent=51 // pred_check_branch
          %347 = sbr.rel (%p345) target = $region56
        $region55: #{tpu_custom_call.1} parent=51 // pred_region
          %s348 = sand.u32 %s98, 1
          %s349 = scalar_lea.sflag [#allocation4], %s348
          %s350 = sand.u32 %s98, 1
          %s351 = smul.addr %s350, 16
          %s352 = scalar_lea.vmem [#allocation8], %s351
          %353 = dma.done %s349, 256
        $region56: #{tpu_custom_call.1} parent=51 // pred_fallthru
          _
      $region52: #{tpu_custom_call.1} parent=5 // pred_fallthru
        _
    $region6: #{tpu_custom_call.1} parent=1 // loop_footer
      %s20 = sadd.s32 1, %s16
    $region7: #{tpu_custom_call.1} parent=1 // loop_footer_branch
      %15 = sbr.rel target = $region3
    $region8: #{tpu_custom_call.1} parent=1 // loop_exit
      _
    %354 = vsyncpa [#allocation3], 1
    %s355 = scalar_lea.sflag [#allocation3], 1
    %356 = vsyncpa %s355, 1
    %357 = vsyncpa [#allocation6], 1
    %358 = vsyncpa [#allocation4], 1
    %s359 = scalar_lea.sflag [#allocation4], 1
    %360 = vsyncpa %s359, 1

</llo_original>
